<compile_context>
chip_gen: v5e
topology: v5e:2x2
jax: 0.10.0
libtpu: 0.0.40
codegen_flags: <defaults>
</compile_context>

<pallas_src>
import functools

import jax
import jax.numpy as jnp
import numpy as np
from jax.experimental import pallas as pl
from jax.experimental.pallas import tpu as pltpu

LN_EPS = 1e-5
LANE = 128


def _round_up(x, m):
    return (x + m - 1) // m * m


def _conv_relu_norm_kernel(x_hbm, w_ref, b_ref, g_ref, beta_ref, o_ref,
                           im2col_ref, sem_ref, *,
                           kernel_size, c_in_pad, c_out_true, tile_t):
    # x_hbm     : (B, T_round + 2*pad, c_in_pad)  padded input in HBM (pl.ANY)
    # w_ref     : (K * c_in_pad, c_out_pad)       im2col conv weights (VMEM)
    # b_ref     : (1, c_out_pad)                  conv bias   (f32, zero-padded)
    # g_ref     : (1, c_out_pad)                  LN gamma    (f32, zero-padded)
    # beta_ref  : (1, c_out_pad)                  LN beta     (f32, zero-padded)
    # o_ref     : (1, tile_t, c_out_pad)
    # im2col_ref: (tile_t, K * c_in_pad)          scratch in compute dtype
    # sem_ref   : (K,)                            DMA semaphores
    b = pl.program_id(0)
    t = pl.program_id(1)
    row0 = pl.multiple_of(t * tile_t, 8)

    # Gather the K shifted (tile_t, c_in_pad) halo windows straight into the
    # im2col scratch via K DMAs: no sublane-unaligned relayout in VMEM, and the
    # conv collapses to a single MXU matmul with contraction depth K*C_in.
    copies = []
    for j in range(kernel_size):
        cp = pltpu.make_async_copy(
            x_hbm.at[b, pl.ds(row0 + j, tile_t), :],
            im2col_ref.at[:, pl.ds(j * c_in_pad, c_in_pad)],
            sem_ref.at[j])
        cp.start()
        copies.append(cp)
    for cp in copies:
        cp.wait()
    # TODO(synk): double-buffer the im2col DMAs across grid steps to overlap the
    # input fetch with compute (needs sequential-grid priming logic).

    # Conv1d == one matmul; bf16 (or f32) operands, f32 accumulation on the MXU.
    acc = jnp.dot(im2col_ref[...], w_ref[...],
                  preferred_element_type=jnp.float32)
    acc = acc + b_ref[...]

    # ReLU
    acc = jnp.maximum(acc, 0.0)

    # LayerNorm over the true channel count.  Padded channels are exactly 0
    # (zero-padded weights/bias -> relu(0) = 0), so sums over the padded lane
    # axis equal sums over real channels; one-pass stats (E[x^2] - mean^2).
    inv_c = 1.0 / c_out_true
    mean = jnp.sum(acc, axis=-1, keepdims=True) * inv_c
    var = jnp.sum(acc * acc, axis=-1, keepdims=True) * inv_c - mean * mean
    var = jnp.maximum(var, 0.0)
    xhat = (acc - mean) * jax.lax.rsqrt(var + LN_EPS)
    out = xhat * g_ref[...] + beta_ref[...]   # padded channels -> 0 (gamma=beta=0)

    # Dropout: p=0.0 / eval mode -> identity.
    # TODO(synk): training-mode dropout (pltpu.prng_seed + keep-mask) not implemented.
    o_ref[0] = out.astype(o_ref.dtype)


def conv_relu_norm_channels_last(x_tc, conv_w, conv_b, ln_gamma, ln_beta, *,
                                 kernel_size, tile_t=256,
                                 compute_dtype=jnp.bfloat16):
    """Channel-last entry point: x_tc (B, T, C_in) -> (B, T, C_out).

    Prefer this when stacking ConvReLUNorm layers (avoids two HBM transpose
    passes per layer).
    """
    B, T, C_in = x_tc.shape
    C_out = conv_w.shape[0]
    K = kernel_size
    if K % 2 != 1:
        raise ValueError("kernel_size must be odd: PyTorch Conv1d(padding=K//2) "
                         "changes the output length for even K.")
    pad = K // 2

    c_in_p = _round_up(C_in, LANE)
    c_out_p = _round_up(C_out, LANE)
    tT = min(_round_up(tile_t, 8), _round_up(T, 8))
    T_round = _round_up(T, tT)
    nT = T_round // tT

    # Activations: channel-last, time/channel padded, compute dtype (bf16 MXU).
    x = jnp.pad(x_tc, ((0, 0), (pad, T_round - T + pad), (0, c_in_p - C_in)))
    x = x.astype(compute_dtype)

    # Conv weight (C_out, C_in, K) -> im2col weight (K*c_in_p, c_out_p).
    w = jnp.transpose(conv_w, (2, 1, 0))                       # (K, C_in, C_out)
    w = jnp.pad(w, ((0, 0), (0, c_in_p - C_in), (0, c_out_p - C_out)))
    w = w.reshape(K * c_in_p, c_out_p).astype(compute_dtype)

    b2 = jnp.pad(conv_b, (0, c_out_p - C_out)).reshape(1, c_out_p).astype(jnp.float32)
    g2 = jnp.pad(ln_gamma, (0, c_out_p - C_out)).reshape(1, c_out_p).astype(jnp.float32)
    beta2 = jnp.pad(ln_beta, (0, c_out_p - C_out)).reshape(1, c_out_p).astype(jnp.float32)

    kern = functools.partial(_conv_relu_norm_kernel, kernel_size=K,
                             c_in_pad=c_in_p, c_out_true=C_out, tile_t=tT)

    flops = 2 * B * T_round * (K * c_in_p) * c_out_p + 8 * B * T_round * c_out_p
    bytes_accessed = (x.size * x.dtype.itemsize + w.size * w.dtype.itemsize
                      + B * T_round * c_out_p * x_tc.dtype.itemsize)

    out_full = pl.pallas_call(
        kern,
        out_shape=jax.ShapeDtypeStruct((B, T_round, c_out_p), x_tc.dtype),
        grid_spec=pltpu.PrefetchScalarGridSpec(
            num_scalar_prefetch=0,
            grid=(B, nT),
            in_specs=[
                pl.BlockSpec(memory_space=pl.ANY),                      # x (manual DMA)
                pl.BlockSpec((K * c_in_p, c_out_p), lambda b, t: (0, 0)),
                pl.BlockSpec((1, c_out_p), lambda b, t: (0, 0)),
                pl.BlockSpec((1, c_out_p), lambda b, t: (0, 0)),
                pl.BlockSpec((1, c_out_p), lambda b, t: (0, 0)),
            ],
            out_specs=pl.BlockSpec((1, tT, c_out_p), lambda b, t: (b, t, 0)),
            scratch_shapes=[
                pltpu.VMEM((tT, K * c_in_p), compute_dtype),
                pltpu.SemaphoreType.DMA((K,)),
            ]),
        compiler_params=pltpu.CompilerParams(
            dimension_semantics=("parallel", "parallel"),
            vmem_limit_bytes=32 * 1024 * 1024),
        cost_estimate=pl.CostEstimate(
            flops=int(flops),
            transcendentals=int(B * T_round),
            bytes_accessed=int(bytes_accessed)),
    )(x, w, b2, g2, beta2)

    # Drop time/channel padding.
    return out_full[:, :T, :C_out]


def conv_relu_norm(signal, conv_w, conv_b, ln_gamma, ln_beta, *,
                   kernel_size, tile_t=256, compute_dtype=jnp.bfloat16):
    """PyTorch-layout entry point: signal (B, C_in, T) -> (B, C_out, T)."""
    out_tc = conv_relu_norm_channels_last(
        jnp.transpose(signal, (0, 2, 1)), conv_w, conv_b, ln_gamma, ln_beta,
        kernel_size=kernel_size, tile_t=tile_t, compute_dtype=compute_dtype)
    return jnp.transpose(out_tc, (0, 2, 1))


def _reference(signal, conv_w, conv_b, ln_gamma, ln_beta, *, kernel_size):
    """Pure-JAX reference matching torch semantics (eval mode)."""
    pad = kernel_size // 2
    out = jax.lax.conv_general_dilated(
        signal.astype(jnp.float32),
        conv_w.astype(jnp.float32),
        window_strides=(1,),
        padding=[(pad, pad)],
        dimension_numbers=("NCH", "OIH", "NCH"),
    ) + conv_b[None, :, None]
    out = jnp.maximum(out, 0.0)
    x = jnp.transpose(out, (0, 2, 1))
    mean = jnp.mean(x, axis=-1, keepdims=True)
    var = jnp.mean((x - mean) ** 2, axis=-1, keepdims=True)
    x = (x - mean) * jax.lax.rsqrt(var + LN_EPS) * ln_gamma + ln_beta
    return jnp.transpose(x, (0, 2, 1))


if __name__ == "__main__":
    B, C_in, C_out, T, K = 2, 32, 32, 16, 3

    key = jax.random.PRNGKey(0)
    k_x, k_w, k_b, k_g, k_beta = jax.random.split(key, 5)

    signal = jax.random.normal(k_x, (B, C_in, T), dtype=jnp.float32)
    conv_w = 0.1 * jax.random.normal(k_w, (C_out, C_in, K), dtype=jnp.float32)
    conv_b = 0.1 * jax.random.normal(k_b, (C_out,), dtype=jnp.float32)
    ln_gamma = 1.0 + 0.05 * jax.random.normal(k_g, (C_out,), dtype=jnp.float32)
    ln_beta = 0.05 * jax.random.normal(k_beta, (C_out,), dtype=jnp.float32)

    ref = _reference(signal, conv_w, conv_b, ln_gamma, ln_beta, kernel_size=K)

    # f32 compute path: tight check.
    out_f32 = conv_relu_norm(signal, conv_w, conv_b, ln_gamma, ln_beta,
                             kernel_size=K, compute_dtype=jnp.float32)
    out_f32 = jax.block_until_ready(out_f32)
    np.testing.assert_allclose(np.asarray(out_f32), np.asarray(ref),
                               rtol=1e-4, atol=1e-4)
    assert out_f32.shape == (B, C_out, T)

    # bf16 MXU path (production default): loose check.
    out_bf16 = conv_relu_norm(signal, conv_w, conv_b, ln_gamma, ln_beta,
                              kernel_size=K, compute_dtype=jnp.bfloat16)
    out_bf16 = jax.block_until_ready(out_bf16)
    np.testing.assert_allclose(np.asarray(out_bf16), np.asarray(ref),
                               rtol=8e-2, atol=8e-2)
    assert out_bf16.shape == (B, C_out, T)

    print("KERNEL_OK")
</pallas_src>

<mosaic_0001>
module attributes {stable_mosaic.version = 11 : i64} {
  func.func @_conv_relu_norm_kernel(%arg0: i32, %arg1: i32, %arg2: memref<2x18x128xf32, #tpu.memory_space<any>>, %arg3: memref<384x128xf32, #tpu.memory_space<vmem>>, %arg4: memref<1x128xf32, #tpu.memory_space<vmem>>, %arg5: memref<1x128xf32, #tpu.memory_space<vmem>>, %arg6: memref<1x128xf32, #tpu.memory_space<vmem>>, %arg7: memref<1x16x128xf32, #tpu.memory_space<vmem>>, %arg8: memref<16x384xf32, #tpu.memory_space<vmem>>, %arg9: memref<3x!tpu.dma_semaphore, #tpu.memory_space<semaphore_mem>>) attributes {dimension_semantics = [#tpu.dimension_semantics<parallel>, #tpu.dimension_semantics<parallel>], iteration_bounds = array<i64: 2, 1>, scalar_prefetch = 0 : i64, scratch_operands = 2 : i64, tpu.core_type = #tpu.core_type<tc>, window_params = [{}, {pipeline_mode = #tpu.pipeline_mode<synchronous>, transform_indices = @transform_1, window_bounds = array<i64: 384, 128>}, {pipeline_mode = #tpu.pipeline_mode<synchronous>, transform_indices = @transform_2, window_bounds = array<i64: 1, 128>}, {pipeline_mode = #tpu.pipeline_mode<synchronous>, transform_indices = @transform_3, window_bounds = array<i64: 1, 128>}, {pipeline_mode = #tpu.pipeline_mode<synchronous>, transform_indices = @transform_4, window_bounds = array<i64: 1, 128>}, {transform_indices = @transform_5, window_bounds = array<i64: 1, 16, 128>}]} {
    %c16_i32 = arith.constant 16 : i32
    %0 = arith.muli %arg1, %c16_i32 : i32
    %1 = tpu.assume_multiple %0, 8 : i32
    %c0_i32 = arith.constant 0 : i32
    %2 = arith.addi %1, %c0_i32 : i32
    %c0_i32_0 = arith.constant 0 : i32
    %c0_i32_1 = arith.constant 0 : i32
    %3 = tpu.memref_slice %arg2[%arg0, %2, %c0_i32_1] : memref<2x18x128xf32, #tpu.memory_space<any>> -> memref<1x16x128xf32, #tpu.memory_space<any>>
    %4 = tpu.memref_squeeze %3 : memref<1x16x128xf32, #tpu.memory_space<any>> -> memref<16x128xf32, #tpu.memory_space<any>>
    %c0_i32_2 = arith.constant 0 : i32
    %c0_i32_3 = arith.constant 0 : i32
    %5 = tpu.memref_slice %arg8[%c0_i32_2, %c0_i32_3] : memref<16x384xf32, #tpu.memory_space<vmem>> -> memref<16x128xf32, #tpu.memory_space<vmem>>
    %6 = tpu.memref_slice %arg9[%c0_i32_0] : memref<3x!tpu.dma_semaphore, #tpu.memory_space<semaphore_mem>> -> memref<1x!tpu.dma_semaphore, #tpu.memory_space<semaphore_mem>>
    %7 = tpu.memref_squeeze %6 : memref<1x!tpu.dma_semaphore, #tpu.memory_space<semaphore_mem>> -> memref<!tpu.dma_semaphore, #tpu.memory_space<semaphore_mem>>
    tpu.enqueue_dma source(%4 : memref<16x128xf32, #tpu.memory_space<any>>) target(%5 : memref<16x128xf32, #tpu.memory_space<vmem>>) target_semaphore(%7 : memref<!tpu.dma_semaphore, #tpu.memory_space<semaphore_mem>>)
    %c1_i32 = arith.constant 1 : i32
    %8 = arith.addi %1, %c1_i32 : i32
    %c1_i32_4 = arith.constant 1 : i32
    %c0_i32_5 = arith.constant 0 : i32
    %9 = tpu.memref_slice %arg2[%arg0, %8, %c0_i32_5] : memref<2x18x128xf32, #tpu.memory_space<any>> -> memref<1x16x128xf32, #tpu.memory_space<any>>
    %10 = tpu.memref_squeeze %9 : memref<1x16x128xf32, #tpu.memory_space<any>> -> memref<16x128xf32, #tpu.memory_space<any>>
    %c0_i32_6 = arith.constant 0 : i32
    %c128_i32 = arith.constant 128 : i32
    %11 = tpu.memref_slice %arg8[%c0_i32_6, %c128_i32] : memref<16x384xf32, #tpu.memory_space<vmem>> -> memref<16x128xf32, #tpu.memory_space<vmem>>
    %12 = tpu.memref_slice %arg9[%c1_i32_4] : memref<3x!tpu.dma_semaphore, #tpu.memory_space<semaphore_mem>> -> memref<1x!tpu.dma_semaphore, #tpu.memory_space<semaphore_mem>>
    %13 = tpu.memref_squeeze %12 : memref<1x!tpu.dma_semaphore, #tpu.memory_space<semaphore_mem>> -> memref<!tpu.dma_semaphore, #tpu.memory_space<semaphore_mem>>
    tpu.enqueue_dma source(%10 : memref<16x128xf32, #tpu.memory_space<any>>) target(%11 : memref<16x128xf32, #tpu.memory_space<vmem>>) target_semaphore(%13 : memref<!tpu.dma_semaphore, #tpu.memory_space<semaphore_mem>>)
    %c2_i32 = arith.constant 2 : i32
    %14 = arith.addi %1, %c2_i32 : i32
    %c2_i32_7 = arith.constant 2 : i32
    %c0_i32_8 = arith.constant 0 : i32
    %15 = tpu.memref_slice %arg2[%arg0, %14, %c0_i32_8] : memref<2x18x128xf32, #tpu.memory_space<any>> -> memref<1x16x128xf32, #tpu.memory_space<any>>
    %16 = tpu.memref_squeeze %15 : memref<1x16x128xf32, #tpu.memory_space<any>> -> memref<16x128xf32, #tpu.memory_space<any>>
    %c0_i32_9 = arith.constant 0 : i32
    %c256_i32 = arith.constant 256 : i32
    %17 = tpu.memref_slice %arg8[%c0_i32_9, %c256_i32] : memref<16x384xf32, #tpu.memory_space<vmem>> -> memref<16x128xf32, #tpu.memory_space<vmem>>
    %18 = tpu.memref_slice %arg9[%c2_i32_7] : memref<3x!tpu.dma_semaphore, #tpu.memory_space<semaphore_mem>> -> memref<1x!tpu.dma_semaphore, #tpu.memory_space<semaphore_mem>>
    %19 = tpu.memref_squeeze %18 : memref<1x!tpu.dma_semaphore, #tpu.memory_space<semaphore_mem>> -> memref<!tpu.dma_semaphore, #tpu.memory_space<semaphore_mem>>
    tpu.enqueue_dma source(%16 : memref<16x128xf32, #tpu.memory_space<any>>) target(%17 : memref<16x128xf32, #tpu.memory_space<vmem>>) target_semaphore(%19 : memref<!tpu.dma_semaphore, #tpu.memory_space<semaphore_mem>>)
    %c0_i32_10 = arith.constant 0 : i32
    %c0_i32_11 = arith.constant 0 : i32
    %20 = tpu.memref_slice %arg2[%arg0, %2, %c0_i32_11] : memref<2x18x128xf32, #tpu.memory_space<any>> -> memref<1x16x128xf32, #tpu.memory_space<any>>
    %21 = tpu.memref_squeeze %20 : memref<1x16x128xf32, #tpu.memory_space<any>> -> memref<16x128xf32, #tpu.memory_space<any>>
    %c0_i32_12 = arith.constant 0 : i32
    %c0_i32_13 = arith.constant 0 : i32
    %22 = tpu.memref_slice %arg8[%c0_i32_12, %c0_i32_13] : memref<16x384xf32, #tpu.memory_space<vmem>> -> memref<16x128xf32, #tpu.memory_space<vmem>>
    %23 = tpu.memref_slice %arg9[%c0_i32_10] : memref<3x!tpu.dma_semaphore, #tpu.memory_space<semaphore_mem>> -> memref<1x!tpu.dma_semaphore, #tpu.memory_space<semaphore_mem>>
    %24 = tpu.memref_squeeze %23 : memref<1x!tpu.dma_semaphore, #tpu.memory_space<semaphore_mem>> -> memref<!tpu.dma_semaphore, #tpu.memory_space<semaphore_mem>>
    tpu.wait_dma2 semaphore(%24 : memref<!tpu.dma_semaphore, #tpu.memory_space<semaphore_mem>>) src(%21 : memref<16x128xf32, #tpu.memory_space<any>>) dst(%22 : memref<16x128xf32, #tpu.memory_space<vmem>>)
    %c1_i32_14 = arith.constant 1 : i32
    %c0_i32_15 = arith.constant 0 : i32
    %25 = tpu.memref_slice %arg2[%arg0, %8, %c0_i32_15] : memref<2x18x128xf32, #tpu.memory_space<any>> -> memref<1x16x128xf32, #tpu.memory_space<any>>
    %26 = tpu.memref_squeeze %25 : memref<1x16x128xf32, #tpu.memory_space<any>> -> memref<16x128xf32, #tpu.memory_space<any>>
    %c0_i32_16 = arith.constant 0 : i32
    %c128_i32_17 = arith.constant 128 : i32
    %27 = tpu.memref_slice %arg8[%c0_i32_16, %c128_i32_17] : memref<16x384xf32, #tpu.memory_space<vmem>> -> memref<16x128xf32, #tpu.memory_space<vmem>>
    %28 = tpu.memref_slice %arg9[%c1_i32_14] : memref<3x!tpu.dma_semaphore, #tpu.memory_space<semaphore_mem>> -> memref<1x!tpu.dma_semaphore, #tpu.memory_space<semaphore_mem>>
    %29 = tpu.memref_squeeze %28 : memref<1x!tpu.dma_semaphore, #tpu.memory_space<semaphore_mem>> -> memref<!tpu.dma_semaphore, #tpu.memory_space<semaphore_mem>>
    tpu.wait_dma2 semaphore(%29 : memref<!tpu.dma_semaphore, #tpu.memory_space<semaphore_mem>>) src(%26 : memref<16x128xf32, #tpu.memory_space<any>>) dst(%27 : memref<16x128xf32, #tpu.memory_space<vmem>>)
    %c2_i32_18 = arith.constant 2 : i32
    %c0_i32_19 = arith.constant 0 : i32
    %30 = tpu.memref_slice %arg2[%arg0, %14, %c0_i32_19] : memref<2x18x128xf32, #tpu.memory_space<any>> -> memref<1x16x128xf32, #tpu.memory_space<any>>
    %31 = tpu.memref_squeeze %30 : memref<1x16x128xf32, #tpu.memory_space<any>> -> memref<16x128xf32, #tpu.memory_space<any>>
    %c0_i32_20 = arith.constant 0 : i32
    %c256_i32_21 = arith.constant 256 : i32
    %32 = tpu.memref_slice %arg8[%c0_i32_20, %c256_i32_21] : memref<16x384xf32, #tpu.memory_space<vmem>> -> memref<16x128xf32, #tpu.memory_space<vmem>>
    %33 = tpu.memref_slice %arg9[%c2_i32_18] : memref<3x!tpu.dma_semaphore, #tpu.memory_space<semaphore_mem>> -> memref<1x!tpu.dma_semaphore, #tpu.memory_space<semaphore_mem>>
    %34 = tpu.memref_squeeze %33 : memref<1x!tpu.dma_semaphore, #tpu.memory_space<semaphore_mem>> -> memref<!tpu.dma_semaphore, #tpu.memory_space<semaphore_mem>>
    tpu.wait_dma2 semaphore(%34 : memref<!tpu.dma_semaphore, #tpu.memory_space<semaphore_mem>>) src(%31 : memref<16x128xf32, #tpu.memory_space<any>>) dst(%32 : memref<16x128xf32, #tpu.memory_space<vmem>>)
    %c0 = arith.constant 0 : index
    %c0_22 = arith.constant 0 : index
    %35 = vector.load %arg8[%c0, %c0_22] : memref<16x384xf32, #tpu.memory_space<vmem>>, vector<16x384xf32>
    %c0_23 = arith.constant 0 : index
    %c0_24 = arith.constant 0 : index
    %36 = vector.load %arg3[%c0_23, %c0_24] : memref<384x128xf32, #tpu.memory_space<vmem>>, vector<384x128xf32>
    %cst = arith.constant dense<0.000000e+00> : vector<16x128xf32>
    %37 = tpu.matmul %35, %36, %cst {dimension_numbers = #tpu.dot_dimension_numbers<[1], [0], [0], [1], [0, 0, 1, 1], [], []>} : vector<16x384xf32>, vector<384x128xf32>, vector<16x128xf32> -> vector<16x128xf32>
    %c0_25 = arith.constant 0 : index
    %c0_26 = arith.constant 0 : index
    %38 = vector.load %arg4[%c0_25, %c0_26] : memref<1x128xf32, #tpu.memory_space<vmem>>, vector<1x128xf32>
    %39 = vector.broadcast %38 : vector<1x128xf32> to vector<16x128xf32>
    %40 = arith.addf %37, %39 : vector<16x128xf32>
    %cst_27 = arith.constant 0.000000e+00 : f32
    %41 = vector.broadcast %cst_27 : f32 to vector<16x128xf32>
    %42 = arith.maximumf %40, %41 : vector<16x128xf32>
    %cst_28 = arith.constant dense<0.000000e+00> : vector<16xf32>
    %43 = vector.multi_reduction <add>, %42, %cst_28 [1] : vector<16x128xf32> to vector<16xf32>
    %44 = vector.shape_cast %43 : vector<16xf32> to vector<16x1xf32>
    %cst_29 = arith.constant 3.125000e-02 : f32
    %45 = vector.broadcast %cst_29 : f32 to vector<16x1xf32>
    %46 = arith.mulf %44, %45 : vector<16x1xf32>
    %47 = arith.mulf %42, %42 : vector<16x128xf32>
    %cst_30 = arith.constant dense<0.000000e+00> : vector<16xf32>
    %48 = vector.multi_reduction <add>, %47, %cst_30 [1] : vector<16x128xf32> to vector<16xf32>
    %49 = vector.shape_cast %48 : vector<16xf32> to vector<16x1xf32>
    %cst_31 = arith.constant 3.125000e-02 : f32
    %50 = vector.broadcast %cst_31 : f32 to vector<16x1xf32>
    %51 = arith.mulf %49, %50 : vector<16x1xf32>
    %52 = arith.mulf %46, %46 : vector<16x1xf32>
    %53 = arith.subf %51, %52 : vector<16x1xf32>
    %cst_32 = arith.constant 0.000000e+00 : f32
    %54 = vector.broadcast %cst_32 : f32 to vector<16x1xf32>
    %55 = arith.maximumf %53, %54 : vector<16x1xf32>
    %56 = vector.broadcast %46 : vector<16x1xf32> to vector<16x128xf32>
    %57 = arith.subf %42, %56 : vector<16x128xf32>
    %cst_33 = arith.constant 9.99999974E-6 : f32
    %58 = vector.broadcast %cst_33 : f32 to vector<16x1xf32>
    %59 = arith.addf %55, %58 : vector<16x1xf32>
    %60 = math.rsqrt %59 : vector<16x1xf32>
    %61 = vector.broadcast %60 : vector<16x1xf32> to vector<16x128xf32>
    %62 = arith.mulf %57, %61 : vector<16x128xf32>
    %c0_34 = arith.constant 0 : index
    %c0_35 = arith.constant 0 : index
    %63 = vector.load %arg5[%c0_34, %c0_35] : memref<1x128xf32, #tpu.memory_space<vmem>>, vector<1x128xf32>
    %64 = vector.broadcast %63 : vector<1x128xf32> to vector<16x128xf32>
    %65 = arith.mulf %62, %64 : vector<16x128xf32>
    %c0_36 = arith.constant 0 : index
    %c0_37 = arith.constant 0 : index
    %66 = vector.load %arg6[%c0_36, %c0_37] : memref<1x128xf32, #tpu.memory_space<vmem>>, vector<1x128xf32>
    %67 = vector.broadcast %66 : vector<1x128xf32> to vector<16x128xf32>
    %68 = arith.addf %65, %67 : vector<16x128xf32>
    %c0_38 = arith.constant 0 : index
    %c0_39 = arith.constant 0 : index
    %c0_40 = arith.constant 0 : index
    %69 = vector.load %arg7[%c0_38, %c0_39, %c0_40] : memref<1x16x128xf32, #tpu.memory_space<vmem>>, vector<1x16x128xf32>
    %70 = vector.shape_cast %69 : vector<1x16x128xf32> to vector<16x128xf32>
    %71 = vector.shape_cast %68 : vector<16x128xf32> to vector<1x16x128xf32>
    tpu.vector_store %arg7[%c0_38, %c0_39, %c0_40], %71 {strides = array<i32>} : memref<1x16x128xf32, #tpu.memory_space<vmem>>, vector<1x16x128xf32>,
    return
  }
  func.func @transform_1(%arg0: i32, %arg1: i32) -> (i32, i32) {
    %c0_i32 = arith.constant 0 : i32
    %c0_i32_0 = arith.constant 0 : i32
    %c0_i32_1 = arith.constant 0 : i32
    return %c0_i32, %c0_i32_0 : i32, i32
  }
  func.func @transform_2(%arg0: i32, %arg1: i32) -> (i32, i32) {
    %c0_i32 = arith.constant 0 : i32
    %c0_i32_0 = arith.constant 0 : i32
    %c0_i32_1 = arith.constant 0 : i32
    return %c0_i32, %c0_i32_0 : i32, i32
  }
  func.func @transform_3(%arg0: i32, %arg1: i32) -> (i32, i32) {
    %c0_i32 = arith.constant 0 : i32
    %c0_i32_0 = arith.constant 0 : i32
    %c0_i32_1 = arith.constant 0 : i32
    return %c0_i32, %c0_i32_0 : i32, i32
  }
  func.func @transform_4(%arg0: i32, %arg1: i32) -> (i32, i32) {
    %c0_i32 = arith.constant 0 : i32
    %c0_i32_0 = arith.constant 0 : i32
    %c0_i32_1 = arith.constant 0 : i32
    return %c0_i32, %c0_i32_0 : i32, i32
  }
  func.func @transform_5(%arg0: i32, %arg1: i32) -> (i32, i32, i32) {
    %c0_i32 = arith.constant 0 : i32
    %c0_i32_0 = arith.constant 0 : i32
    return %arg0, %arg1, %c0_i32 : i32, i32, i32
  }
}

</mosaic_0001>

<llo_original>
// kernel: tpu_custom_call.1
$region0: #{tpu_custom_call.1}
  #allocation0 [shape = 'u32[]', space=smem, size = 0x4, offset = 0x4, fixed_abs, tag = 'smem constant byte address 0x4 - core index']
  #allocation1 [shape = 'u32[72,128]{1,0:T(1,128)}', space=vmem, size = 0x9000, scoped, tag = 'internal scratch']
  #allocation2 [shape = 'f32[16,384]{1,0:T(8,128)}', space=vmem, size = 0x6000, scoped, tag = 'scratch operand']
  #allocation3 [shape = 's32[3]{0}', space=sflag, size = 0xc, scoped, tag = 'scratch operand']
  #allocation8 [shape = 's32[]', space=sflag, size = 0x4, offset = 0, fixed_abs, tag = 'sflag constant byte address 0x0 - dummy sync flag']
  #allocation9 [shape = 's32[]', space=sflag, size = 0x4, offset = 0, fixed_abs, tag = 'sflag constant byte address 0x0 - dummy sync flag']
  #allocation10 [shape = 's32[]', space=sflag, size = 0x4, offset = 0, fixed_abs, tag = 'sflag constant byte address 0x0 - dummy sync flag']
  %s0 = inlined_call_operand.vmem [shape: f32[2,18,128], index: 0, kind: input, shape index: {}]
  %s1 = inlined_call_operand.hbm [shape: f32[384,128], index: 1, kind: input, shape index: {}]
  %s2 = inlined_call_operand.vmem [shape: f32[1,128], index: 2, kind: input, shape index: {}]
  %s3 = inlined_call_operand.vmem [shape: f32[1,128], index: 3, kind: input, shape index: {}]
  %s4 = inlined_call_operand.vmem [shape: f32[1,128], index: 4, kind: input, shape index: {}]
  %s5 = inlined_call_operand.hbm [shape: f32[2,16,128], index: 5, kind: output, shape index: {}]
  %s6 = sld [smem:[#allocation0]]
  $region155: #{tpu_custom_call.1} parent=0
    _
  %s8 = ssub.s32 1, %s6
  %s9 = scalar_select 0, %s8, %s6
  $region1: #{tpu_custom_call.1} parent=0
    #allocation4 [shape = 'u8[196608]{0}', space=vmem, size = 0x30000, scoped, tag = 'input window, operand 1, single buffered']
    #allocation5 [shape = 's32[2]{0}', space=sflag, size = 0x8, scoped, tag = 'scoped memory for tpu_custom_call.1']
    #allocation6 [shape = 's32[2]{0}', space=sflag, size = 0x8, scoped, tag = 'scoped memory for tpu_custom_call.1']
    #allocation7 [shape = 'u8[16384]{0}', space=vmem, size = 0x4000, scoped, tag = 'output window, operand 0']
    %10 = vsyncpa [#allocation5], 0
    %11 = vsyncpa [#allocation6], 0
    %s12 = scalar_lea.sflag [#allocation6], 1
    %13 = vsyncpa %s12, 0
    loop: start=0, step=1, limit=4
    $region2: #{tpu_custom_call.1} parent=1 // loop_pre_header
      _
    $region3: #{tpu_custom_call.1} parent=1 // loop_header
      %s15 = sphi 0, %s19
      %p16 = scmp.ge.s32.totalorder %s15, 4
      %s22 = sphi 0, %s34
      %s23 = sphi 0, %s30
      %s24 = sphi 0, %s22
      %s25 = sphi 0, %s23
      %s26 = sphi 0, %s24
      %s27 = sphi 0, %s25
      %s35 = sphi 0, %s35
      %s37 = sphi 0, %s35
      %s38 = sphi 0, %s37
      %s52 = sphi 0, %s38
      %s56 = sphi 0, %s56
      %s58 = sphi 0, %s56
      %s59 = sphi 0, %s58
      %s73 = sphi 0, %s59
      %s77 = sphi 0, %s77
      %s79 = sphi 0, %s77
      %s80 = sphi 0, %s79
      %s94 = sphi 0, %s80
      %s98 = sphi 0, %s98
      %s100 = sphi 0, %s98
      %s101 = sphi 0, %s100
      %s115 = sphi 0, %s101
      %s123 = sphi 0, %s125
      %s126 = sphi 0, %s123
      %s127 = sphi 0, %s126
      %s143 = sphi 0, %s127
    $region4: #{tpu_custom_call.1} parent=1 // loop_header_branch
      %18 = sbr.rel (%p16) target = $region8
    $region5: #{tpu_custom_call.1} parent=1 // loop_body
      %s20 = ssub.s32 %s15, 1
      %s21 = ssub.s32 %s15, 2
      %s28 = sadd.s32 1, %s23
      %p29 = scmp.ge.s32.totalorder %s28, 1
      %s30 = scalar_select %p29, 0, %s28
      %s31 = sadd.s32 1, %s22
      %s32 = scalar_select %p29, %s31, %s22
      %p33 = scmp.ge.s32.totalorder %s32, 2
      %s34 = scalar_select %p33, 0, %s32
      %s36 = sadd.s32 %s35, 1
      %p39 = scmp.eq.s32.totalorder %s15, 1
      %p40 = scmp.ne.s32.totalorder %s35, %s37
      %p41 = scmp.eq.s32.totalorder %s15, 0
      %p42 = por %p40, %p41
      %p43 = scmp.ne.s32.totalorder %s35, %s37
      %p44 = scmp.eq.s32.totalorder %s20, 1
      %p45 = por %p43, %p44
      %p46 = scmp.ne.s32.totalorder %s37, %s38
      %p47 = scmp.eq.s32.totalorder %s20, 0
      %p48 = por %p46, %p47
      %p49 = scmp.ne.s32.totalorder %s37, %s38
      %p50 = scmp.eq.s32.totalorder %s21, 1
      %p51 = por %p49, %p50
      %p53 = scmp.ne.s32.totalorder %s38, %s52
      %p54 = scmp.eq.s32.totalorder %s21, 0
      %p55 = por %p53, %p54
      %s57 = sadd.s32 %s56, 1
      %p60 = scmp.eq.s32.totalorder %s15, 1
      %p61 = scmp.ne.s32.totalorder %s56, %s58
      %p62 = scmp.eq.s32.totalorder %s15, 0
      %p63 = por %p61, %p62
      %p64 = scmp.ne.s32.totalorder %s56, %s58
      %p65 = scmp.eq.s32.totalorder %s20, 1
      %p66 = por %p64, %p65
      %p67 = scmp.ne.s32.totalorder %s58, %s59
      %p68 = scmp.eq.s32.totalorder %s20, 0
      %p69 = por %p67, %p68
      %p70 = scmp.ne.s32.totalorder %s58, %s59
      %p71 = scmp.eq.s32.totalorder %s21, 1
      %p72 = por %p70, %p71
      %p74 = scmp.ne.s32.totalorder %s59, %s73
      %p75 = scmp.eq.s32.totalorder %s21, 0
      %p76 = por %p74, %p75
      %s78 = sadd.s32 %s77, 1
      %p81 = scmp.eq.s32.totalorder %s15, 1
      %p82 = scmp.ne.s32.totalorder %s77, %s79
      %p83 = scmp.eq.s32.totalorder %s15, 0
      %p84 = por %p82, %p83
      %p85 = scmp.ne.s32.totalorder %s77, %s79
      %p86 = scmp.eq.s32.totalorder %s20, 1
      %p87 = por %p85, %p86
      %p88 = scmp.ne.s32.totalorder %s79, %s80
      %p89 = scmp.eq.s32.totalorder %s20, 0
      %p90 = por %p88, %p89
      %p91 = scmp.ne.s32.totalorder %s79, %s80
      %p92 = scmp.eq.s32.totalorder %s21, 1
      %p93 = por %p91, %p92
      %p95 = scmp.ne.s32.totalorder %s80, %s94
      %p96 = scmp.eq.s32.totalorder %s21, 0
      %p97 = por %p95, %p96
      %s99 = sadd.s32 %s98, 1
      %p102 = scmp.eq.s32.totalorder %s15, 1
      %p103 = scmp.ne.s32.totalorder %s98, %s100
      %p104 = scmp.eq.s32.totalorder %s15, 0
      %p105 = por %p103, %p104
      %p106 = scmp.ne.s32.totalorder %s98, %s100
      %p107 = scmp.eq.s32.totalorder %s20, 1
      %p108 = por %p106, %p107
      %p109 = scmp.ne.s32.totalorder %s100, %s101
      %p110 = scmp.eq.s32.totalorder %s20, 0
      %p111 = por %p109, %p110
      %p112 = scmp.ne.s32.totalorder %s100, %s101
      %p113 = scmp.eq.s32.totalorder %s21, 1
      %p114 = por %p112, %p113
      %p116 = scmp.ne.s32.totalorder %s101, %s115
      %p117 = scmp.eq.s32.totalorder %s21, 0
      %p118 = por %p116, %p117
      %s119 = ssub.s32 %s22, %s34
      %s120 = ssub.s32 %s23, %s30
      %s121 = sor.u32 %s119, %s120
      %p122 = scmp.eq.s32.totalorder %s121, 0
      %s124 = sadd.s32 %s123, 1
      %s125 = scalar_select %p122, %s123, %s124
      %p128 = pneg %p122
      %p129 = scmp.eq.s32.totalorder %s15, 1
      %p130 = por %p128, %p129
      %p131 = scmp.ne.s32.totalorder %s123, %s126
      %p132 = scmp.eq.s32.totalorder %s15, 0
      %p133 = por %p131, %p132
      %p134 = scmp.ne.s32.totalorder %s123, %s126
      %p135 = scmp.eq.s32.totalorder %s20, 1
      %p136 = por %p134, %p135
      %p137 = scmp.ne.s32.totalorder %s126, %s127
      %p138 = scmp.eq.s32.totalorder %s20, 0
      %p139 = por %p137, %p138
      %p140 = scmp.ne.s32.totalorder %s126, %s127
      %p141 = scmp.eq.s32.totalorder %s21, 1
      %p142 = por %p140, %p141
      %p144 = scmp.ne.s32.totalorder %s127, %s143
      %p145 = scmp.eq.s32.totalorder %s21, 0
      %p146 = por %p144, %p145
      %p147 = scmp.le.s32.totalorder 1, %s15
      %p148 = scmp.lt.s32.totalorder %s15, 3
      %p149 = pnand %p147, %p148
      %p150 = pneg %p149
      // Predicated region
      $region9: #{tpu_custom_call.1} parent=5 // pred_check
        _
      $region10: #{tpu_custom_call.1} parent=5 // pred_check_branch
        %152 = sbr.rel (%p149) target = $region12
      $region11: #{tpu_custom_call.1} parent=5 // pred_region
        %s153 = ssub.s32 %s15, 1
        // Predicated region
        $region13: #{tpu_custom_call.1} parent=11 // pred_check
          %p154 = pneg %p48
        $region14: #{tpu_custom_call.1} parent=11 // pred_check_branch
          %156 = sbr.rel (%p154) target = $region16
        $region15: #{tpu_custom_call.1} parent=11 // pred_region
          %158 = vsyncadd [#allocation5], 0
          %s159 = sshll.u32 %s1, 4
          %s160 = int_to_ptr.hbm [resolvable:$true] %s159
          %s161 = sshll.u32 [#allocation4], 4
          %s162 = int_to_ptr.vmem [resolvable:$true] %s161
          %167 = dma.hbm_to_vmem [thread:$0]  %s160, 6144, %s162, [#allocation5], 128, 128, 8
        $region16: #{tpu_custom_call.1} parent=11 // pred_fallthru
          _
        // Predicated region
        $region17: #{tpu_custom_call.1} parent=11 // pred_check
          %p168 = pneg %p69
        $region18: #{tpu_custom_call.1} parent=11 // pred_check_branch
          %170 = sbr.rel (%p168) target = $region20
        $region19: #{tpu_custom_call.1} parent=11 // pred_region
          _
        $region20: #{tpu_custom_call.1} parent=11 // pred_fallthru
          _
        // Predicated region
        $region21: #{tpu_custom_call.1} parent=11 // pred_check
          %p171 = pneg %p90
        $region22: #{tpu_custom_call.1} parent=11 // pred_check_branch
          %173 = sbr.rel (%p171) target = $region24
        $region23: #{tpu_custom_call.1} parent=11 // pred_region
          _
        $region24: #{tpu_custom_call.1} parent=11 // pred_fallthru
          _
        // Predicated region
        $region25: #{tpu_custom_call.1} parent=11 // pred_check
          %p174 = pneg %p111
        $region26: #{tpu_custom_call.1} parent=11 // pred_check_branch
          %176 = sbr.rel (%p174) target = $region28
        $region27: #{tpu_custom_call.1} parent=11 // pred_region
          _
        $region28: #{tpu_custom_call.1} parent=11 // pred_fallthru
          _
      $region12: #{tpu_custom_call.1} parent=5 // pred_fallthru
        _
      %p177 = scmp.lt.s32.totalorder %s15, 2
      // Predicated region
      $region29: #{tpu_custom_call.1} parent=5 // pred_check
        %p178 = pneg %p177
      $region30: #{tpu_custom_call.1} parent=5 // pred_check_branch
        %180 = sbr.rel (%p178) target = $region32
      $region31: #{tpu_custom_call.1} parent=5 // pred_region
        _
      $region32: #{tpu_custom_call.1} parent=5 // pred_fallthru
        _
      %p181 = scmp.le.s32.totalorder 1, %s15
      %p182 = scmp.lt.s32.totalorder %s15, 3
      %p183 = pnand %p181, %p182
      %p184 = pneg %p183
      // Predicated region
      $region33: #{tpu_custom_call.1} parent=5 // pred_check
        _
      $region34: #{tpu_custom_call.1} parent=5 // pred_check_branch
        %186 = sbr.rel (%p183) target = $region36
      $region35: #{tpu_custom_call.1} parent=5 // pred_region
        %s187 = ssub.s32 %s15, 1
        // Predicated region
        $region37: #{tpu_custom_call.1} parent=35 // pred_check
          %p188 = pneg %p48
        $region38: #{tpu_custom_call.1} parent=35 // pred_check_branch
          %190 = sbr.rel (%p188) target = $region40
        $region39: #{tpu_custom_call.1} parent=35 // pred_region
          %192 = dma.done [#allocation5], 6144
        $region40: #{tpu_custom_call.1} parent=35 // pred_fallthru
          _
        %p193 = pneg %p48
        %p194 = pneg %p45
        %p195 = pneg %p69
        %p196 = pneg %p66
        %p197 = pneg %p90
        %p198 = pneg %p87
        %p199 = pneg %p111
        %p200 = pneg %p108
        %p201 = pneg %p139
        %p202 = pneg %p136
        %s203 = sand.u32 %s126, 1
        %s204 = scalar_lea.sflag [#allocation6], %s203
        %s205 = sand.u32 %s126, 1
        %s206 = smul.addr %s205, 16
        %s207 = scalar_lea.vmem [#allocation7], %s206
        %s208 = smul.u32 2, %s25
        %s209 = smul.u32 %s25, 16
        %s210 = smul.u32 %s24, 24
        %s211 = sadd.s32 %s209, %s210
        %s212 = scalar_lea.vmem %s0, %s211
        // Predicated region
        $region41: #{tpu_custom_call.1} parent=35 // pred_check
          _
        $region42: #{tpu_custom_call.1} parent=35 // pred_check_branch
          %214 = sbr.rel (0) target = $region44
        $region43: #{tpu_custom_call.1} parent=35 // pred_region
          // Predicated region
          $region56: #{tpu_custom_call.1} parent=43 // pred_check
            _
          $region57: #{tpu_custom_call.1} parent=43 // pred_check_branch
            %232 = sbr.rel (0) target = $region59
          $region58: #{tpu_custom_call.1} parent=43 // pred_region
            loop: start=0, step=1, limit=1
            $region60: #{tpu_custom_call.1} parent=58 // loop_pre_header
              _
            $region61: #{tpu_custom_call.1} parent=58 // loop_header
              %s234 = sphi 0, %s238
              %p235 = scmp.ge.s32.totalorder %s234, 1
              %s239 = sphi %s212, %s212
              %s240 = sphi [#allocation2], [#allocation2]
            $region62: #{tpu_custom_call.1} parent=58 // loop_header_branch
              %237 = sbr.rel (%p235) target = $region66
            $region63: #{tpu_custom_call.1} parent=58 // loop_body
              %v241 = vld [vmem:[%s239] sm:$0xff]
              %242 = vst [vmem:[%s240] sm:$0xff] %v241
              %v243 = vld [vmem:[%s239 + $0x8] sm:$0xff]
              %244 = vst [vmem:[%s240 + $0x18] sm:$0xff] %v243
            $region64: #{tpu_custom_call.1} parent=58 // loop_footer
              %s238 = sadd.s32 1, %s234
            $region65: #{tpu_custom_call.1} parent=58 // loop_footer_branch
              %233 = sbr.rel target = $region61
            $region66: #{tpu_custom_call.1} parent=58 // loop_exit
              _
          $region59: #{tpu_custom_call.1} parent=43 // pred_fallthru
            _
          // Predicated region
          $region67: #{tpu_custom_call.1} parent=43 // pred_check
            _
          $region68: #{tpu_custom_call.1} parent=43 // pred_check_branch
            %246 = sbr.rel target = $region70
          $region69: #{tpu_custom_call.1} parent=43 // pred_region
            _
          $region70: #{tpu_custom_call.1} parent=43 // pred_fallthru
            _
        $region44: #{tpu_custom_call.1} parent=35 // pred_fallthru
          _
        // Predicated region
        $region45: #{tpu_custom_call.1} parent=35 // pred_check
          _
        $region46: #{tpu_custom_call.1} parent=35 // pred_check_branch
          %216 = sbr.rel target = $region48
        $region47: #{tpu_custom_call.1} parent=35 // pred_region
          %s218 = ssub.s32 256, 1
          loop: start=0, step=1, limit=1
          $region49: #{tpu_custom_call.1} parent=47 // loop_pre_header
            _
          $region50: #{tpu_custom_call.1} parent=47 // loop_header
            %s220 = sphi 0, %s224
            %p221 = scmp.ge.s32.totalorder %s220, 1
            %s225 = sphi %s212, %s212
            %s226 = sphi [#allocation2], [#allocation2]
          $region51: #{tpu_custom_call.1} parent=47 // loop_header_branch
            %223 = sbr.rel (%p221) target = $region55
          $region52: #{tpu_custom_call.1} parent=47 // loop_body
            %v227 = vld [vmem:[%s225] sm:%s218]
            %228 = vst [vmem:[%s226] sm:%s218] %v227
            %v229 = vld [vmem:[%s225 + $0x8] sm:%s218]
            %230 = vst [vmem:[%s226 + $0x18] sm:%s218] %v229
          $region53: #{tpu_custom_call.1} parent=47 // loop_footer
            %s224 = sadd.s32 1, %s220
          $region54: #{tpu_custom_call.1} parent=47 // loop_footer_branch
            %219 = sbr.rel target = $region50
          $region55: #{tpu_custom_call.1} parent=47 // loop_exit
            _
        $region48: #{tpu_custom_call.1} parent=35 // pred_fallthru
          _
        // Predicated region
        $region71: #{tpu_custom_call.1} parent=35 // pred_check
          _
        $region72: #{tpu_custom_call.1} parent=35 // pred_check_branch
          %249 = sbr.rel (0) target = $region74
        $region73: #{tpu_custom_call.1} parent=35 // pred_region
          %250 = vsyncadd [#allocation3], 256
        $region74: #{tpu_custom_call.1} parent=35 // pred_fallthru
          _
        %s251 = sadd.s32 %s209, 1
        %s252 = sadd.s32 %s251, %s210
        %s253 = scalar_lea.vmem %s0, %s252
        %s254 = scalar_lea.vmem [#allocation2], 8
        %s255 = scalar_lea.sflag [#allocation3], 1
        // Predicated region
        $region75: #{tpu_custom_call.1} parent=35 // pred_check
          _
        $region76: #{tpu_custom_call.1} parent=35 // pred_check_branch
          %257 = sbr.rel (0) target = $region78
        $region77: #{tpu_custom_call.1} parent=35 // pred_region
          // Predicated region
          $region90: #{tpu_custom_call.1} parent=77 // pred_check
            _
          $region91: #{tpu_custom_call.1} parent=77 // pred_check_branch
            %275 = sbr.rel (0) target = $region93
          $region92: #{tpu_custom_call.1} parent=77 // pred_region
            loop: start=0, step=1, limit=1
            $region94: #{tpu_custom_call.1} parent=92 // loop_pre_header
              _
            $region95: #{tpu_custom_call.1} parent=92 // loop_header
              %s277 = sphi 0, %s281
              %p278 = scmp.ge.s32.totalorder %s277, 1
              %s282 = sphi %s253, %s253
              %s283 = sphi %s254, %s254
            $region96: #{tpu_custom_call.1} parent=92 // loop_header_branch
              %280 = sbr.rel (%p278) target = $region100
            $region97: #{tpu_custom_call.1} parent=92 // loop_body
              %v284 = vld [vmem:[%s282] sm:$0xff]
              %285 = vst [vmem:[%s283] sm:$0xff] %v284
              %v286 = vld [vmem:[%s282 + $0x8] sm:$0xff]
              %287 = vst [vmem:[%s283 + $0x18] sm:$0xff] %v286
            $region98: #{tpu_custom_call.1} parent=92 // loop_footer
              %s281 = sadd.s32 1, %s277
            $region99: #{tpu_custom_call.1} parent=92 // loop_footer_branch
              %276 = sbr.rel target = $region95
            $region100: #{tpu_custom_call.1} parent=92 // loop_exit
              _
          $region93: #{tpu_custom_call.1} parent=77 // pred_fallthru
            _
          // Predicated region
          $region101: #{tpu_custom_call.1} parent=77 // pred_check
            _
          $region102: #{tpu_custom_call.1} parent=77 // pred_check_branch
            %289 = sbr.rel target = $region104
          $region103: #{tpu_custom_call.1} parent=77 // pred_region
            _
          $region104: #{tpu_custom_call.1} parent=77 // pred_fallthru
            _
        $region78: #{tpu_custom_call.1} parent=35 // pred_fallthru
          _
        // Predicated region
        $region79: #{tpu_custom_call.1} parent=35 // pred_check
          _
        $region80: #{tpu_custom_call.1} parent=35 // pred_check_branch
          %259 = sbr.rel target = $region82
        $region81: #{tpu_custom_call.1} parent=35 // pred_region
          %s261 = ssub.s32 256, 1
          loop: start=0, step=1, limit=1
          $region83: #{tpu_custom_call.1} parent=81 // loop_pre_header
            _
          $region84: #{tpu_custom_call.1} parent=81 // loop_header
            %s263 = sphi 0, %s267
            %p264 = scmp.ge.s32.totalorder %s263, 1
            %s268 = sphi %s253, %s253
            %s269 = sphi %s254, %s254
          $region85: #{tpu_custom_call.1} parent=81 // loop_header_branch
            %266 = sbr.rel (%p264) target = $region89
          $region86: #{tpu_custom_call.1} parent=81 // loop_body
            %v270 = vld [vmem:[%s268] sm:%s261]
            %271 = vst [vmem:[%s269] sm:%s261] %v270
            %v272 = vld [vmem:[%s268 + $0x8] sm:%s261]
            %273 = vst [vmem:[%s269 + $0x18] sm:%s261] %v272
          $region87: #{tpu_custom_call.1} parent=81 // loop_footer
            %s267 = sadd.s32 1, %s263
          $region88: #{tpu_custom_call.1} parent=81 // loop_footer_branch
            %262 = sbr.rel target = $region84
          $region89: #{tpu_custom_call.1} parent=81 // loop_exit
            _
        $region82: #{tpu_custom_call.1} parent=35 // pred_fallthru
          _
        // Predicated region
        $region105: #{tpu_custom_call.1} parent=35 // pred_check
          _
        $region106: #{tpu_custom_call.1} parent=35 // pred_check_branch
          %292 = sbr.rel (0) target = $region108
        $region107: #{tpu_custom_call.1} parent=35 // pred_region
          %293 = vsyncadd %s255, 256
        $region108: #{tpu_custom_call.1} parent=35 // pred_fallthru
          _
        %s294 = sadd.s32 %s209, 2
        %s295 = sadd.s32 %s294, %s210
        %s296 = scalar_lea.vmem %s0, %s295
        %s297 = scalar_lea.vmem [#allocation2], 16
        %s298 = scalar_lea.sflag [#allocation3], 2
        // Predicated region
        $region109: #{tpu_custom_call.1} parent=35 // pred_check
          _
        $region110: #{tpu_custom_call.1} parent=35 // pred_check_branch
          %300 = sbr.rel (0) target = $region112
        $region111: #{tpu_custom_call.1} parent=35 // pred_region
          // Predicated region
          $region124: #{tpu_custom_call.1} parent=111 // pred_check
            _
          $region125: #{tpu_custom_call.1} parent=111 // pred_check_branch
            %318 = sbr.rel (0) target = $region127
          $region126: #{tpu_custom_call.1} parent=111 // pred_region
            loop: start=0, step=1, limit=1
            $region128: #{tpu_custom_call.1} parent=126 // loop_pre_header
              _
            $region129: #{tpu_custom_call.1} parent=126 // loop_header
              %s320 = sphi 0, %s324
              %p321 = scmp.ge.s32.totalorder %s320, 1
              %s325 = sphi %s296, %s296
              %s326 = sphi %s297, %s297
            $region130: #{tpu_custom_call.1} parent=126 // loop_header_branch
              %323 = sbr.rel (%p321) target = $region134
            $region131: #{tpu_custom_call.1} parent=126 // loop_body
              %v327 = vld [vmem:[%s325] sm:$0xff]
              %328 = vst [vmem:[%s326] sm:$0xff] %v327
              %v329 = vld [vmem:[%s325 + $0x8] sm:$0xff]
              %330 = vst [vmem:[%s326 + $0x18] sm:$0xff] %v329
            $region132: #{tpu_custom_call.1} parent=126 // loop_footer
              %s324 = sadd.s32 1, %s320
            $region133: #{tpu_custom_call.1} parent=126 // loop_footer_branch
              %319 = sbr.rel target = $region129
            $region134: #{tpu_custom_call.1} parent=126 // loop_exit
              _
          $region127: #{tpu_custom_call.1} parent=111 // pred_fallthru
            _
          // Predicated region
          $region135: #{tpu_custom_call.1} parent=111 // pred_check
            _
          $region136: #{tpu_custom_call.1} parent=111 // pred_check_branch
            %332 = sbr.rel target = $region138
          $region137: #{tpu_custom_call.1} parent=111 // pred_region
            _
          $region138: #{tpu_custom_call.1} parent=111 // pred_fallthru
            _
        $region112: #{tpu_custom_call.1} parent=35 // pred_fallthru
          _
        // Predicated region
        $region113: #{tpu_custom_call.1} parent=35 // pred_check
          _
        $region114: #{tpu_custom_call.1} parent=35 // pred_check_branch
          %302 = sbr.rel target = $region116
        $region115: #{tpu_custom_call.1} parent=35 // pred_region
          %s304 = ssub.s32 256, 1
          loop: start=0, step=1, limit=1
          $region117: #{tpu_custom_call.1} parent=115 // loop_pre_header
            _
          $region118: #{tpu_custom_call.1} parent=115 // loop_header
            %s306 = sphi 0, %s310
            %p307 = scmp.ge.s32.totalorder %s306, 1
            %s311 = sphi %s296, %s296
            %s312 = sphi %s297, %s297
          $region119: #{tpu_custom_call.1} parent=115 // loop_header_branch
            %309 = sbr.rel (%p307) target = $region123
          $region120: #{tpu_custom_call.1} parent=115 // loop_body
            %v313 = vld [vmem:[%s311] sm:%s304]
            %314 = vst [vmem:[%s312] sm:%s304] %v313
            %v315 = vld [vmem:[%s311 + $0x8] sm:%s304]
            %316 = vst [vmem:[%s312 + $0x18] sm:%s304] %v315
          $region121: #{tpu_custom_call.1} parent=115 // loop_footer
            %s310 = sadd.s32 1, %s306
          $region122: #{tpu_custom_call.1} parent=115 // loop_footer_branch
            %305 = sbr.rel target = $region118
          $region123: #{tpu_custom_call.1} parent=115 // loop_exit
            _
        $region116: #{tpu_custom_call.1} parent=35 // pred_fallthru
          _
        // Predicated region
        $region139: #{tpu_custom_call.1} parent=35 // pred_check
          _
        $region140: #{tpu_custom_call.1} parent=35 // pred_check_branch
          %335 = sbr.rel (0) target = $region142
        $region141: #{tpu_custom_call.1} parent=35 // pred_region
          %336 = vsyncadd %s298, 256
        $region142: #{tpu_custom_call.1} parent=35 // pred_fallthru
          _
        %s337 = smul.u32 8, 2
        %s338 = smul.u32 %s337, 1
        %s339 = sshll.u32 %s338, 4
        %340 = dma.done [#allocation3], %s339
        %s341 = sshll.u32 %s338, 4
        %342 = dma.done %s255, %s341
        %s343 = sshll.u32 %s338, 4
        %344 = dma.done %s298, %s343
        %v345 = vld [vmem:[#allocation2] sm:$0xff]
        %v346 = vld [vmem:[#allocation2 + $0x8] sm:$0xff]
        %v347 = vld [vmem:[#allocation2 + $0x10] sm:$0xff]
        %v348 = vld [vmem:[#allocation2 + $0x18] sm:$0xff]
        %v349 = vld [vmem:[#allocation2 + $0x20] sm:$0xff]
        %v350 = vld [vmem:[#allocation2 + $0x28] sm:$0xff]
        %v351 = vld [vmem:[#allocation4] sm:$0xff]
        %v352 = vld [vmem:[#allocation4 + $0x8] sm:$0xff]
        %v353 = vld [vmem:[#allocation4 + $0x10] sm:$0xff]
        %v354 = vld [vmem:[#allocation4 + $0x18] sm:$0xff]
        %v355 = vld [vmem:[#allocation4 + $0x20] sm:$0xff]
        %v356 = vld [vmem:[#allocation4 + $0x28] sm:$0xff]
        %v357 = vld [vmem:[#allocation4 + $0x30] sm:$0xff]
        %v358 = vld [vmem:[#allocation4 + $0x38] sm:$0xff]
        %v359 = vld [vmem:[#allocation4 + $0x40] sm:$0xff]
        %v360 = vld [vmem:[#allocation4 + $0x48] sm:$0xff]
        %v361 = vld [vmem:[#allocation4 + $0x50] sm:$0xff]
        %v362 = vld [vmem:[#allocation4 + $0x58] sm:$0xff]
        %v363 = vld [vmem:[#allocation4 + $0x60] sm:$0xff]
        %v364 = vld [vmem:[#allocation4 + $0x68] sm:$0xff]
        %v365 = vld [vmem:[#allocation4 + $0x70] sm:$0xff]
        %v366 = vld [vmem:[#allocation4 + $0x78] sm:$0xff]
        %v367 = vld [vmem:[#allocation4 + $0x80] sm:$0xff]
        %v368 = vld [vmem:[#allocation4 + $0x88] sm:$0xff]
        %v369 = vld [vmem:[#allocation4 + $0x90] sm:$0xff]
        %v370 = vld [vmem:[#allocation4 + $0x98] sm:$0xff]
        %v371 = vld [vmem:[#allocation4 + $0xa0] sm:$0xff]
        %v372 = vld [vmem:[#allocation4 + $0xa8] sm:$0xff]
        %v373 = vld [vmem:[#allocation4 + $0xb0] sm:$0xff]
        %v374 = vld [vmem:[#allocation4 + $0xb8] sm:$0xff]
        %v375 = vld [vmem:[#allocation4 + $0xc0] sm:$0xff]
        %v376 = vld [vmem:[#allocation4 + $0xc8] sm:$0xff]
        %v377 = vld [vmem:[#allocation4 + $0xd0] sm:$0xff]
        %v378 = vld [vmem:[#allocation4 + $0xd8] sm:$0xff]
        %v379 = vld [vmem:[#allocation4 + $0xe0] sm:$0xff]
        %v380 = vld [vmem:[#allocation4 + $0xe8] sm:$0xff]
        %v381 = vld [vmem:[#allocation4 + $0xf0] sm:$0xff]
        %v382 = vld [vmem:[#allocation4 + $0xf8] sm:$0xff]
        %v383 = vld [vmem:[#allocation4 + $0x100] sm:$0xff]
        %v384 = vld [vmem:[#allocation4 + $0x108] sm:$0xff]
        %v385 = vld [vmem:[#allocation4 + $0x110] sm:$0xff]
        %v386 = vld [vmem:[#allocation4 + $0x118] sm:$0xff]
        %v387 = vld [vmem:[#allocation4 + $0x120] sm:$0xff]
        %v388 = vld [vmem:[#allocation4 + $0x128] sm:$0xff]
        %v389 = vld [vmem:[#allocation4 + $0x130] sm:$0xff]
        %v390 = vld [vmem:[#allocation4 + $0x138] sm:$0xff]
        %v391 = vld [vmem:[#allocation4 + $0x140] sm:$0xff]
        %v392 = vld [vmem:[#allocation4 + $0x148] sm:$0xff]
        %v393 = vld [vmem:[#allocation4 + $0x150] sm:$0xff]
        %v394 = vld [vmem:[#allocation4 + $0x158] sm:$0xff]
        %v395 = vld [vmem:[#allocation4 + $0x160] sm:$0xff]
        %v396 = vld [vmem:[#allocation4 + $0x168] sm:$0xff]
        %v397 = vld [vmem:[#allocation4 + $0x170] sm:$0xff]
        %v398 = vld [vmem:[#allocation4 + $0x178] sm:$0xff]
        %v399 = vld [vmem:[%s2] sm:$0x1]
        %v401 = vperm.slane %v399, 0
        %403 = vmatpush.msra.mxu0 %v366
        %404 = vmatpush.msra.mxu0 %v365
        %405 = vmatpush.msra.mxu0 %v364
        %406 = vmatpush.msra.mxu0 %v363
        %407 = vmatpush.msra.mxu0 %v362
        %408 = vmatpush.msra.mxu0 %v361
        %409 = vmatpush.msra.mxu0 %v360
        %410 = vmatpush.msra.mxu0 %v359
        %411 = vmatpush.msra.mxu0 %v358
        %412 = vmatpush.msra.mxu0 %v357
        %413 = vmatpush.msra.mxu0 %v356
        %414 = vmatpush.msra.mxu0 %v355
        %415 = vmatpush.msra.mxu0 %v354
        %416 = vmatpush.msra.mxu0 %v353
        %417 = vmatpush.msra.mxu0 %v352
        %418 = vmatpush.msra.mxu0 %v351
        %419 = vmatmul.f32.gmra.mxu0 %v345
        %v420 = vpop.f32.mrf.mxu0
        %v421 = vadd.f32 %v401, %v420
        %422 = vmatmul.f32.gmra.mxu0 %v348
        %v423 = vpop.f32.mrf.mxu0
        %v424 = vadd.f32 %v401, %v423
        %425 = vdwg.mxu0
        %426 = vmatpush.msra.mxu0 %v382
        %427 = vmatpush.msra.mxu0 %v381
        %428 = vmatpush.msra.mxu0 %v380
        %429 = vmatpush.msra.mxu0 %v379
        %430 = vmatpush.msra.mxu0 %v378
        %431 = vmatpush.msra.mxu0 %v377
        %432 = vmatpush.msra.mxu0 %v376
        %433 = vmatpush.msra.mxu0 %v375
        %434 = vmatpush.msra.mxu0 %v374
        %435 = vmatpush.msra.mxu0 %v373
        %436 = vmatpush.msra.mxu0 %v372
        %437 = vmatpush.msra.mxu0 %v371
        %438 = vmatpush.msra.mxu0 %v370
        %439 = vmatpush.msra.mxu0 %v369
        %440 = vmatpush.msra.mxu0 %v368
        %441 = vmatpush.msra.mxu0 %v367
        %442 = vmatmul.f32.gmra.mxu0 %v346
        %v443 = vpop.f32.mrf.mxu0
        %v444 = vadd.f32 %v421, %v443
        %445 = vmatmul.f32.gmra.mxu0 %v349
        %v446 = vpop.f32.mrf.mxu0
        %v447 = vadd.f32 %v424, %v446
        %448 = vdwg.mxu0
        %449 = vmatpush.msra.mxu0 %v398
        %450 = vmatpush.msra.mxu0 %v397
        %451 = vmatpush.msra.mxu0 %v396
        %452 = vmatpush.msra.mxu0 %v395
        %453 = vmatpush.msra.mxu0 %v394
        %454 = vmatpush.msra.mxu0 %v393
        %455 = vmatpush.msra.mxu0 %v392
        %456 = vmatpush.msra.mxu0 %v391
        %457 = vmatpush.msra.mxu0 %v390
        %458 = vmatpush.msra.mxu0 %v389
        %459 = vmatpush.msra.mxu0 %v388
        %460 = vmatpush.msra.mxu0 %v387
        %461 = vmatpush.msra.mxu0 %v386
        %462 = vmatpush.msra.mxu0 %v385
        %463 = vmatpush.msra.mxu0 %v384
        %464 = vmatpush.msra.mxu0 %v383
        %465 = vmatmul.f32.gmra.mxu0 %v347
        %v466 = vpop.f32.mrf.mxu0
        %v467 = vadd.f32 %v444, %v466
        %468 = vmatmul.f32.gmra.mxu0 %v350
        %v469 = vpop.f32.mrf.mxu0
        %v470 = vadd.f32 %v447, %v469
        %471 = vdwg.mxu0
        %v472 = vmax.f32 %v467, 0.0
        %v473 = vmax.f32 %v470, 0.0
        %474 = vadd.xlane.f32.xlu0 %v472
        %v475 = vpop.xlane.xlu0 %474
        %476 = vadd.xlane.f32.xlu0 %v473
        %v477 = vpop.xlane.xlu0 %476
        %v478 = vmul.f32 %v475, 0.03125
        %v479 = vmul.f32 %v477, 0.03125
        %v480 = vmul.f32 %v472, %v472
        %v481 = vmul.f32 %v473, %v473
        %482 = vadd.xlane.f32.xlu0 %v480
        %v483 = vpop.xlane.xlu0 %482
        %484 = vadd.xlane.f32.xlu0 %v481
        %v485 = vpop.xlane.xlu0 %484
        %v486 = vmul.f32 %v483, 0.03125
        %v487 = vmul.f32 %v485, 0.03125
        %v488 = vmul.f32 %v478, %v478
        %v489 = vmul.f32 %v479, %v479
        %v490 = vsub.f32 %v486, %v488
        %v491 = vsub.f32 %v487, %v489
        %v492 = vmax.f32 %v490, 0.0
        %v493 = vmax.f32 %v491, 0.0
        %v494 = vsub.f32 %v472, %v478
        %v495 = vsub.f32 %v473, %v479
        %v496 = vadd.f32 %v492, 1e-05
        %v497 = vadd.f32 %v493, 1e-05
        %v498 = vrsqrt.pop %v496
        %v499 = vmul.f32 %v498, %v496
        %v500 = vmul.f32 %v499, %v498
        %v501 = vmul.f32 0.5, %v500
        %v502 = vsub.f32 1.5, %v501
        %v503 = vmul.f32 %v498, %v502
        %vm504 = vweird.f32 %v496
        %vm505 = vweird.f32 %v498
        %vm506 = vmor %vm504, %vm505
        %v507 = vsel %vm506, %v498, %v503
        %v508 = vrsqrt.pop %v497
        %v509 = vmul.f32 %v508, %v497
        %v510 = vmul.f32 %v509, %v508
        %v511 = vmul.f32 0.5, %v510
        %v512 = vsub.f32 1.5, %v511
        %v513 = vmul.f32 %v508, %v512
        %vm514 = vweird.f32 %v497
        %vm515 = vweird.f32 %v508
        %vm516 = vmor %vm514, %vm515
        %v517 = vsel %vm516, %v508, %v513
        %v518 = vmul.f32 %v494, %v507
        %v519 = vmul.f32 %v495, %v517
        %v520 = vld [vmem:[%s3] sm:$0x1]
        %v522 = vperm.slane %v520, 0
        %v524 = vmul.f32 %v518, %v522
        %v525 = vmul.f32 %v519, %v522
        %v526 = vld [vmem:[%s4] sm:$0x1]
        %v528 = vperm.slane %v526, 0
        %v530 = vadd.f32 %v524, %v528
        %v531 = vadd.f32 %v525, %v528
        %532 = vst [vmem:[%s207] sm:$0xff] %v530
        %533 = vst [vmem:[%s207 + $0x8] sm:$0xff] %v531
        %s534 = sand.u32 %s126, 1
        %s535 = scalar_lea.sflag [#allocation6], %s534
        %s536 = sand.u32 %s126, 1
        %s537 = smul.addr %s536, 16
        %s538 = scalar_lea.vmem [#allocation7], %s537
        // Predicated region
        $region143: #{tpu_custom_call.1} parent=35 // pred_check
          %p539 = pneg %p136
        $region144: #{tpu_custom_call.1} parent=35 // pred_check_branch
          %541 = sbr.rel (%p539) target = $region146
        $region145: #{tpu_custom_call.1} parent=35 // pred_region
          %s542 = smul.u32 2, %s25
          %544 = vsyncadd %s535, 0
          %s545 = smul.addr %s24, 2
          %s546 = sadd.s32 %s542, %s545
          %s547 = smul.addr %s546, 8
          %s548 = scalar_lea.hbm %s5, %s547
          %s549 = sshll.u32 %s538, 4
          %s550 = int_to_ptr.vmem [resolvable:$true] %s549
          %s551 = sshll.u32 %s548, 4
          %s552 = int_to_ptr.hbm [resolvable:$true] %s551
          %557 = dma.vmem_to_hbm [thread:$0]  %s550, 256, %s552, %s535, 128, 128, 8
        $region146: #{tpu_custom_call.1} parent=35 // pred_fallthru
          _
      $region36: #{tpu_custom_call.1} parent=5 // pred_fallthru
        _
      %p558 = scmp.le.s32.totalorder 2, %s15
      // Predicated region
      $region147: #{tpu_custom_call.1} parent=5 // pred_check
        %p559 = pneg %p558
      $region148: #{tpu_custom_call.1} parent=5 // pred_check_branch
        %561 = sbr.rel (%p559) target = $region150
      $region149: #{tpu_custom_call.1} parent=5 // pred_region
        %s562 = ssub.s32 %s15, 2
        // Predicated region
        $region151: #{tpu_custom_call.1} parent=149 // pred_check
          %p563 = pneg %p142
        $region152: #{tpu_custom_call.1} parent=149 // pred_check_branch
          %565 = sbr.rel (%p563) target = $region154
        $region153: #{tpu_custom_call.1} parent=149 // pred_region
          %s566 = sand.u32 %s127, 1
          %s567 = scalar_lea.sflag [#allocation6], %s566
          %s568 = sand.u32 %s127, 1
          %s569 = smul.addr %s568, 16
          %s570 = scalar_lea.vmem [#allocation7], %s569
          %572 = dma.done %s567, 256
        $region154: #{tpu_custom_call.1} parent=149 // pred_fallthru
          _
      $region150: #{tpu_custom_call.1} parent=5 // pred_fallthru
        _
    $region6: #{tpu_custom_call.1} parent=1 // loop_footer
      %s19 = sadd.s32 1, %s15
    $region7: #{tpu_custom_call.1} parent=1 // loop_footer_branch
      %14 = sbr.rel target = $region3
    $region8: #{tpu_custom_call.1} parent=1 // loop_exit
      _
    %573 = vsyncpa [#allocation5], 1
    %s574 = scalar_lea.sflag [#allocation5], 1
    %575 = vsyncpa %s574, 1
    %576 = vsyncpa [#allocation6], 1
    %s577 = scalar_lea.sflag [#allocation6], 1
    %578 = vsyncpa %s577, 1
  %579 = vsyncmov [#allocation3]
  %s580 = vpop.sfrf %579
  %p581 = scmp.eq.s32.totalorder %s580, 0
  %p582 = pneg %p581
  %584 = shalt.err (%p582)
  %s585 = scalar_lea.sflag [#allocation3], 1
  %586 = vsyncmov %s585
  %s587 = vpop.sfrf %586
  %p588 = scmp.eq.s32.totalorder %s587, 0
  %p589 = pneg %p588
  %591 = shalt.err (%p589)
  %s592 = scalar_lea.sflag [#allocation3], 2
  %593 = vsyncmov %s592
  %s594 = vpop.sfrf %593
  %p595 = scmp.eq.s32.totalorder %s594, 0
  %p596 = pneg %p595
  %598 = shalt.err (%p596)

</llo_original>
